<compile_context>
chip_gen: v6e
topology: v6e:2x2x1
jax: 0.10.0
libtpu: 0.0.40
codegen_flags: <defaults>
</compile_context>

<pallas_src>
import functools

import jax
import jax.numpy as jnp
import numpy as np
from jax.experimental import pallas as pl
from jax.experimental.pallas import tpu as pltpu


def _attn_cls_kernel(x_ref, wvu_ref, bvu_ref, ww_ref, bw_ref, wc_ref, bc_ref,
                     out_ref, m_sc, l_sc, acc_sc, *, n_total):
    i = pl.program_id(0)
    tn = x_ref.shape[0]
    d = wvu_ref.shape[1] // 2
    k = ww_ref.shape[1]

    @pl.when(i == 0)
    def _init():
        m_sc[...] = jnp.full_like(m_sc, -1e30)
        l_sc[...] = jnp.zeros_like(l_sc)
        acc_sc[...] = jnp.zeros_like(acc_sc)

    x = x_ref[...]                                            # (tn, L) f32/bf16
    needs_mask = (n_total % tn) != 0                          # static Python bool
    if needs_mask:
        row = jax.lax.broadcasted_iota(jnp.int32, (tn, 1), 0) + i * tn
        valid = row < n_total                                 # (tn, 1)
        x = jnp.where(valid, x, jnp.zeros_like(x))

    # Fused gated-attention projection: one MXU matmul covers both branches.
    h = jnp.dot(x, wvu_ref[...],
                preferred_element_type=jnp.float32) + bvu_ref[...]   # (tn, 2D)
    gated = jnp.tanh(h[:, :d]) * jax.nn.sigmoid(h[:, d:])            # (tn, D) f32

    # Attention logits (tn, K); padded tail rows pushed to a huge negative.
    a = jnp.dot(gated, ww_ref[...],
                preferred_element_type=jnp.float32) + bw_ref[...]
    if needs_mask:
        a = jnp.where(valid, a, jnp.full_like(a, -1e30))

    # Online softmax update (running max / running sum / weighted-x acc).
    m_prev = m_sc[...]                                        # (1, K)
    m_new = jnp.maximum(m_prev, jnp.max(a, axis=0, keepdims=True))
    alpha = jnp.exp(m_prev - m_new)                           # (1, K)
    p = jnp.exp(a - m_new)                                    # (tn, K); masked rows -> 0
    l_sc[...] = alpha * l_sc[...] + jnp.sum(p, axis=0, keepdims=True)

    xf = x.astype(jnp.float32)
    if k == 1:
        # VPU multiply + sublane reduce: avoids XLU transpose + M=1 MXU pass.
        contrib = jnp.sum(p * xf, axis=0, keepdims=True)      # (1, L)
        acc_sc[...] = alpha * acc_sc[...] + contrib
    else:
        contrib = jnp.einsum('nk,nl->kl', p, xf,
                             preferred_element_type=jnp.float32)
        acc_sc[...] = jnp.transpose(alpha) * acc_sc[...] + contrib
    m_sc[...] = m_new

    @pl.when(i == pl.num_programs(0) - 1)
    def _finalize():
        # Single divide off the hot loop; exact division keeps tolerance tight.
        if k == 1:
            afeat = acc_sc[...] * (1.0 / l_sc[...])
        else:
            afeat = acc_sc[...] * (1.0 / jnp.transpose(l_sc[...]))
        pred = jnp.dot(afeat, wc_ref[...],
                       preferred_element_type=jnp.float32) + bc_ref[...]
        out_ref[...] = pred.astype(out_ref.dtype)


def _pick_tile_n(n, l, itemsize):
    """Biggest N-tile that keeps the double-buffered x tile ~<= 8 MiB."""
    if n <= 8:
        return n
    budget = 4 * 1024 * 1024                      # per-buffer x tile budget
    tn = budget // max(l * itemsize, 1)
    tn = int(min(tn, 2048, n))
    tn = max(8, tn - tn % 8)                      # sublane multiple
    return n if tn >= n else tn


def fuse_params(params, compute_dtype=jnp.float32):
    """Concatenate the V/U projections once at init; small tensors stay f32."""
    f32 = jnp.float32
    return {
        "Wvu": jnp.concatenate([params["Wv"], params["Wu"]], axis=1).astype(compute_dtype),
        "bvu": jnp.concatenate([params["bv"], params["bu"]], axis=1).astype(f32),
        "Ww": params["Ww"].astype(f32), "bw": params["bw"].astype(f32),
        "Wc": params["Wc"].astype(f32), "bc": params["bc"].astype(f32),
    }


def attention_with_classifier(x, fused, *, tile_n=None):
    """x: (N, L) f32 or bf16. fused: dict from fuse_params. Returns (K, C) f32."""
    n, l = x.shape
    wvu, bvu = fused["Wvu"], fused["bvu"]
    ww, bw = fused["Ww"], fused["bw"]
    wc, bc = fused["Wc"], fused["bc"]
    two_d = wvu.shape[1]
    d = two_d // 2
    k = ww.shape[1]
    c = wc.shape[1]

    itemsize = jnp.dtype(x.dtype).itemsize
    tn = tile_n if tile_n is not None else _pick_tile_n(n, l, itemsize)
    if tn < n:
        tn = max(8, tn - tn % 8)                  # keep the (8, 128) block rule
    else:
        tn = n                                    # single full-extent block is OK
    grid = (pl.cdiv(n, tn),)

    flops = 2 * n * l * two_d + 2 * n * d * k + 2 * n * l * k + 2 * k * l * c
    transcendentals = 2 * n * d + n * k
    bytes_accessed = (n * l * itemsize
                      + wvu.size * jnp.dtype(wvu.dtype).itemsize
                      + 4 * (bvu.size + ww.size + bw.size + wc.size + bc.size + k * c))

    kernel = functools.partial(_attn_cls_kernel, n_total=n)

    return pl.pallas_call(
        kernel,
        out_shape=jax.ShapeDtypeStruct((k, c), jnp.float32),
        grid_spec=pltpu.PrefetchScalarGridSpec(
            num_scalar_prefetch=0,
            grid=grid,
            in_specs=[
                pl.BlockSpec((tn, l), lambda i: (i, 0)),      # x: streamed over N
                pl.BlockSpec(wvu.shape, lambda i: (0, 0)),    # weights: VMEM-resident
                pl.BlockSpec(bvu.shape, lambda i: (0, 0)),
                pl.BlockSpec(ww.shape, lambda i: (0, 0)),
                pl.BlockSpec(bw.shape, lambda i: (0, 0)),
                pl.BlockSpec(wc.shape, lambda i: (0, 0)),
                pl.BlockSpec(bc.shape, lambda i: (0, 0)),
            ],
            out_specs=pl.BlockSpec((k, c), lambda i: (0, 0)),
            scratch_shapes=[
                pltpu.VMEM((1, k), jnp.float32),   # running max
                pltpu.VMEM((1, k), jnp.float32),   # running sum
                pltpu.VMEM((k, l), jnp.float32),   # running weighted-x accumulator
            ],
        ),
        compiler_params=pltpu.CompilerParams(
            dimension_semantics=("arbitrary",),
            vmem_limit_bytes=32 * 1024 * 1024,
        ),
        cost_estimate=pl.CostEstimate(
            flops=flops, transcendentals=transcendentals,
            bytes_accessed=bytes_accessed),
    )(x, wvu, bvu, ww, bw, wc, bc)


def _xavier_normal(key, fan_in, fan_out):
    std = np.sqrt(2.0 / (fan_in + fan_out))
    return (std * jax.random.normal(key, (fan_in, fan_out))).astype(jnp.float32)


def init_params(key, L, D, K, num_cls):
    k1, k2, k3, k4 = jax.random.split(key, 4)
    return {
        "Wv": _xavier_normal(k1, L, D), "bv": jnp.zeros((1, D), jnp.float32),
        "Wu": _xavier_normal(k2, L, D), "bu": jnp.zeros((1, D), jnp.float32),
        "Ww": _xavier_normal(k3, D, K), "bw": jnp.zeros((1, K), jnp.float32),
        "Wc": _xavier_normal(k4, L, num_cls), "bc": jnp.zeros((1, num_cls), jnp.float32),
    }


def _reference(x, p):
    hi = jax.lax.Precision.HIGHEST
    xf = x.astype(jnp.float32)
    av = jnp.tanh(jnp.dot(xf, p["Wv"].astype(jnp.float32), precision=hi) + p["bv"])
    au = jax.nn.sigmoid(jnp.dot(xf, p["Wu"].astype(jnp.float32), precision=hi) + p["bu"])
    a = jnp.dot(av * au, p["Ww"], precision=hi) + p["bw"]     # (N, K)
    a = jax.nn.softmax(a.T, axis=1)                           # (K, N)
    afeat = jnp.dot(a, xf, precision=hi)                      # (K, L)
    return jnp.dot(afeat, p["Wc"], precision=hi) + p["bc"]    # (K, C)


if __name__ == "__main__":
    key = jax.random.PRNGKey(0)

    # --- test 1: f32, small shapes, multi-tile grid with a ragged tail ------
    N, L, D, K, C = 50, 32, 16, 1, 2
    kx, kp, key = jax.random.split(key, 3)
    x = jax.random.normal(kx, (N, L), dtype=jnp.float32)
    params = init_params(kp, L, D, K, C)
    fused = fuse_params(params, compute_dtype=jnp.float32)
    pred = jax.block_until_ready(
        attention_with_classifier(x, fused, tile_n=16))       # 4 tiles, last masked
    ref = _reference(x, params)
    assert pred.shape == (K, C)
    np.testing.assert_allclose(np.asarray(pred), np.asarray(ref),
                               rtol=2e-5, atol=2e-5)

    # --- test 2: bf16 x / fused V-U weight, module-default dims, ragged tail
    N2, L2, D2, K2, C2 = 100, 512, 128, 1, 2
    kx2, kp2 = jax.random.split(key)
    x2 = jax.random.normal(kx2, (N2, L2), dtype=jnp.float32)
    params2 = init_params(kp2, L2, D2, K2, C2)
    fused2 = fuse_params(params2, compute_dtype=jnp.bfloat16)
    x2_bf = x2.astype(jnp.bfloat16)
    pred2 = jax.block_until_ready(
        attention_with_classifier(x2_bf, fused2, tile_n=32))  # 4 tiles, last masked
    # reference on the same bf16-rounded x / V-U weights, f32 math elsewhere
    params2_ref = dict(params2)
    params2_ref["Wv"] = params2["Wv"].astype(jnp.bfloat16).astype(jnp.float32)
    params2_ref["Wu"] = params2["Wu"].astype(jnp.bfloat16).astype(jnp.float32)
    ref2 = _reference(x2_bf.astype(jnp.float32), params2_ref)
    np.testing.assert_allclose(np.asarray(pred2), np.asarray(ref2),
                               rtol=5e-3, atol=5e-3)

    print("KERNEL_OK")
</pallas_src>

<mosaic_0001>
module attributes {stable_mosaic.version = 11 : i64} {
  func.func @_attn_cls_kernel(%arg0: i32, %arg1: memref<16x32xf32, #tpu.memory_space<vmem>>, %arg2: memref<32x32xf32, #tpu.memory_space<vmem>>, %arg3: memref<1x32xf32, #tpu.memory_space<vmem>>, %arg4: memref<16x1xf32, #tpu.memory_space<vmem>>, %arg5: memref<1x1xf32, #tpu.memory_space<vmem>>, %arg6: memref<32x2xf32, #tpu.memory_space<vmem>>, %arg7: memref<1x2xf32, #tpu.memory_space<vmem>>, %arg8: memref<1x2xf32, #tpu.memory_space<vmem>>, %arg9: memref<1x1xf32, #tpu.memory_space<vmem>>, %arg10: memref<1x1xf32, #tpu.memory_space<vmem>>, %arg11: memref<1x32xf32, #tpu.memory_space<vmem>>) attributes {dimension_semantics = [#tpu.dimension_semantics<arbitrary>], iteration_bounds = array<i64: 4>, scalar_prefetch = 0 : i64, scratch_operands = 3 : i64, tpu.core_type = #tpu.core_type<tc>, window_params = [{transform_indices = @transform_0, window_bounds = array<i64: 16, 32>}, {pipeline_mode = #tpu.pipeline_mode<synchronous>, transform_indices = @transform_1, window_bounds = array<i64: 32, 32>}, {pipeline_mode = #tpu.pipeline_mode<synchronous>, transform_indices = @transform_2, window_bounds = array<i64: 1, 32>}, {pipeline_mode = #tpu.pipeline_mode<synchronous>, transform_indices = @transform_3, window_bounds = array<i64: 16, 1>}, {pipeline_mode = #tpu.pipeline_mode<synchronous>, transform_indices = @transform_4, window_bounds = array<i64: 1, 1>}, {pipeline_mode = #tpu.pipeline_mode<synchronous>, transform_indices = @transform_5, window_bounds = array<i64: 32, 2>}, {pipeline_mode = #tpu.pipeline_mode<synchronous>, transform_indices = @transform_6, window_bounds = array<i64: 1, 2>}, {pipeline_mode = #tpu.pipeline_mode<synchronous>, transform_indices = @transform_7, window_bounds = array<i64: 1, 2>}]} {
    %c0_i32 = arith.constant 0 : i32
    %0 = arith.cmpi eq, %arg0, %c0_i32 : i32
    %1 = arith.extui %0 : i1 to i32
    %c0_i32_0 = arith.constant 0 : i32
    %2 = arith.cmpi ne, %1, %c0_i32_0 : i32
    scf.if %2 {
      %cst_30 = arith.constant -1.000000e+30 : f32
      %63 = vector.broadcast %cst_30 : f32 to vector<1x1xf32>
      %c0_31 = arith.constant 0 : index
      %c0_32 = arith.constant 0 : index
      %64 = vector.load %arg9[%c0_31, %c0_32] : memref<1x1xf32, #tpu.memory_space<vmem>>, vector<1x1xf32>
      tpu.vector_store %arg9[%c0_31, %c0_32], %63 {strides = array<i32>} : memref<1x1xf32, #tpu.memory_space<vmem>>, vector<1x1xf32>,
      %cst_33 = arith.constant 0.000000e+00 : f32
      %65 = vector.broadcast %cst_33 : f32 to vector<1x1xf32>
      %c0_34 = arith.constant 0 : index
      %c0_35 = arith.constant 0 : index
      %66 = vector.load %arg10[%c0_34, %c0_35] : memref<1x1xf32, #tpu.memory_space<vmem>>, vector<1x1xf32>
      tpu.vector_store %arg10[%c0_34, %c0_35], %65 {strides = array<i32>} : memref<1x1xf32, #tpu.memory_space<vmem>>, vector<1x1xf32>,
      %cst_36 = arith.constant 0.000000e+00 : f32
      %67 = vector.broadcast %cst_36 : f32 to vector<1x32xf32>
      %c0_37 = arith.constant 0 : index
      %c0_38 = arith.constant 0 : index
      %68 = vector.load %arg11[%c0_37, %c0_38] : memref<1x32xf32, #tpu.memory_space<vmem>>, vector<1x32xf32>
      tpu.vector_store %arg11[%c0_37, %c0_38], %67 {strides = array<i32>} : memref<1x32xf32, #tpu.memory_space<vmem>>, vector<1x32xf32>,
    } else {
    }
    %c0 = arith.constant 0 : index
    %c0_1 = arith.constant 0 : index
    %3 = vector.load %arg1[%c0, %c0_1] : memref<16x32xf32, #tpu.memory_space<vmem>>, vector<16x32xf32>
    %4 = tpu.iota {dimensions = array<i32: 0>} : vector<16x1xi32>
    %c16_i32 = arith.constant 16 : i32
    %5 = arith.muli %arg0, %c16_i32 : i32
    %6 = vector.broadcast %5 : i32 to vector<16x1xi32>
    %7 = arith.addi %4, %6 : vector<16x1xi32>
    %c50_i32 = arith.constant 50 : i32
    %8 = vector.broadcast %c50_i32 : i32 to vector<16x1xi32>
    %9 = arith.cmpi slt, %7, %8 : vector<16x1xi32>
    %cst = arith.constant 0.000000e+00 : f32
    %10 = vector.broadcast %cst : f32 to vector<16x32xf32>
    %11 = vector.shape_cast %9 : vector<16x1xi1> to vector<16x1xi1>
    %12 = vector.broadcast %11 : vector<16x1xi1> to vector<16x32xi1>
    %13 = arith.select %12, %3, %10 : vector<16x32xi1>, vector<16x32xf32>
    %c0_2 = arith.constant 0 : index
    %c0_3 = arith.constant 0 : index
    %14 = vector.load %arg2[%c0_2, %c0_3] : memref<32x32xf32, #tpu.memory_space<vmem>>, vector<32x32xf32>
    %cst_4 = arith.constant dense<0.000000e+00> : vector<16x32xf32>
    %15 = tpu.matmul %13, %14, %cst_4 {dimension_numbers = #tpu.dot_dimension_numbers<[1], [0], [0], [1], [0, 0, 1, 1], [], []>} : vector<16x32xf32>, vector<32x32xf32>, vector<16x32xf32> -> vector<16x32xf32>
    %c0_5 = arith.constant 0 : index
    %c0_6 = arith.constant 0 : index
    %16 = vector.load %arg3[%c0_5, %c0_6] : memref<1x32xf32, #tpu.memory_space<vmem>>, vector<1x32xf32>
    %17 = vector.broadcast %16 : vector<1x32xf32> to vector<16x32xf32>
    %18 = arith.addf %15, %17 : vector<16x32xf32>
    %19 = vector.extract_strided_slice %18 {offsets = [0, 0], sizes = [16, 16], strides = [1, 1]} : vector<16x32xf32> to vector<16x16xf32>
    %20 = math.tanh %19 : vector<16x16xf32>
    %21 = vector.extract_strided_slice %18 {offsets = [0, 16], sizes = [16, 16], strides = [1, 1]} : vector<16x32xf32> to vector<16x16xf32>
    %22 = arith.negf %21 : vector<16x16xf32>
    %23 = math.exp %22 : vector<16x16xf32>
    %cst_7 = arith.constant 1.000000e+00 : f32
    %24 = vector.broadcast %cst_7 : f32 to vector<16x16xf32>
    %25 = arith.addf %24, %23 : vector<16x16xf32>
    %26 = arith.divf %24, %25 : vector<16x16xf32>
    %27 = arith.mulf %20, %26 : vector<16x16xf32>
    %c0_8 = arith.constant 0 : index
    %c0_9 = arith.constant 0 : index
    %28 = vector.load %arg4[%c0_8, %c0_9] : memref<16x1xf32, #tpu.memory_space<vmem>>, vector<16x1xf32>
    %cst_10 = arith.constant dense<0.000000e+00> : vector<16x1xf32>
    %29 = tpu.matmul %27, %28, %cst_10 {dimension_numbers = #tpu.dot_dimension_numbers<[1], [0], [0], [1], [0, 0, 1, 1], [], []>} : vector<16x16xf32>, vector<16x1xf32>, vector<16x1xf32> -> vector<16x1xf32>
    %c0_11 = arith.constant 0 : index
    %c0_12 = arith.constant 0 : index
    %30 = vector.load %arg5[%c0_11, %c0_12] : memref<1x1xf32, #tpu.memory_space<vmem>>, vector<1x1xf32>
    %31 = vector.broadcast %30 : vector<1x1xf32> to vector<16x1xf32>
    %32 = arith.addf %29, %31 : vector<16x1xf32>
    %cst_13 = arith.constant -1.000000e+30 : f32
    %33 = vector.broadcast %cst_13 : f32 to vector<16x1xf32>
    %34 = arith.select %9, %32, %33 : vector<16x1xi1>, vector<16x1xf32>
    %c0_14 = arith.constant 0 : index
    %c0_15 = arith.constant 0 : index
    %35 = vector.load %arg9[%c0_14, %c0_15] : memref<1x1xf32, #tpu.memory_space<vmem>>, vector<1x1xf32>
    %cst_16 = arith.constant dense<0xFF800000> : vector<1xf32>
    %36 = vector.multi_reduction <maximumf>, %34, %cst_16 [0] : vector<16x1xf32> to vector<1xf32>
    %37 = vector.shape_cast %36 : vector<1xf32> to vector<1x1xf32>
    %38 = arith.maximumf %35, %37 : vector<1x1xf32>
    %39 = arith.subf %35, %38 : vector<1x1xf32>
    %40 = math.exp %39 : vector<1x1xf32>
    %41 = vector.broadcast %38 : vector<1x1xf32> to vector<16x1xf32>
    %42 = arith.subf %34, %41 : vector<16x1xf32>
    %43 = math.exp %42 : vector<16x1xf32>
    %c0_17 = arith.constant 0 : index
    %c0_18 = arith.constant 0 : index
    %44 = vector.load %arg10[%c0_17, %c0_18] : memref<1x1xf32, #tpu.memory_space<vmem>>, vector<1x1xf32>
    %45 = arith.mulf %40, %44 : vector<1x1xf32>
    %cst_19 = arith.constant dense<0.000000e+00> : vector<1xf32>
    %46 = vector.multi_reduction <add>, %43, %cst_19 [0] : vector<16x1xf32> to vector<1xf32>
    %47 = vector.shape_cast %46 : vector<1xf32> to vector<1x1xf32>
    %48 = arith.addf %45, %47 : vector<1x1xf32>
    %c0_20 = arith.constant 0 : index
    %c0_21 = arith.constant 0 : index
    %49 = vector.load %arg10[%c0_20, %c0_21] : memref<1x1xf32, #tpu.memory_space<vmem>>, vector<1x1xf32>
    tpu.vector_store %arg10[%c0_20, %c0_21], %48 {strides = array<i32>} : memref<1x1xf32, #tpu.memory_space<vmem>>, vector<1x1xf32>,
    %50 = vector.broadcast %43 : vector<16x1xf32> to vector<16x32xf32>
    %51 = arith.mulf %50, %13 : vector<16x32xf32>
    %cst_22 = arith.constant dense<0.000000e+00> : vector<32xf32>
    %52 = vector.multi_reduction <add>, %51, %cst_22 [0] : vector<16x32xf32> to vector<32xf32>
    %53 = vector.shape_cast %52 : vector<32xf32> to vector<1x32xf32>
    %c0_23 = arith.constant 0 : index
    %c0_24 = arith.constant 0 : index
    %54 = vector.load %arg11[%c0_23, %c0_24] : memref<1x32xf32, #tpu.memory_space<vmem>>, vector<1x32xf32>
    %55 = vector.broadcast %40 : vector<1x1xf32> to vector<1x32xf32>
    %56 = arith.mulf %55, %54 : vector<1x32xf32>
    %57 = arith.addf %56, %53 : vector<1x32xf32>
    %c0_25 = arith.constant 0 : index
    %c0_26 = arith.constant 0 : index
    %58 = vector.load %arg11[%c0_25, %c0_26] : memref<1x32xf32, #tpu.memory_space<vmem>>, vector<1x32xf32>
    tpu.vector_store %arg11[%c0_25, %c0_26], %57 {strides = array<i32>} : memref<1x32xf32, #tpu.memory_space<vmem>>, vector<1x32xf32>,
    %c0_27 = arith.constant 0 : index
    %c0_28 = arith.constant 0 : index
    %59 = vector.load %arg9[%c0_27, %c0_28] : memref<1x1xf32, #tpu.memory_space<vmem>>, vector<1x1xf32>
    tpu.vector_store %arg9[%c0_27, %c0_28], %38 {strides = array<i32>} : memref<1x1xf32, #tpu.memory_space<vmem>>, vector<1x1xf32>,
    %c3_i32 = arith.constant 3 : i32
    %60 = arith.cmpi eq, %arg0, %c3_i32 : i32
    %61 = arith.extui %60 : i1 to i32
    %c0_i32_29 = arith.constant 0 : i32
    %62 = arith.cmpi ne, %61, %c0_i32_29 : i32
    scf.if %62 {
      %c0_30 = arith.constant 0 : index
      %c0_31 = arith.constant 0 : index
      %63 = vector.load %arg11[%c0_30, %c0_31] : memref<1x32xf32, #tpu.memory_space<vmem>>, vector<1x32xf32>
      %c0_32 = arith.constant 0 : index
      %c0_33 = arith.constant 0 : index
      %64 = vector.load %arg10[%c0_32, %c0_33] : memref<1x1xf32, #tpu.memory_space<vmem>>, vector<1x1xf32>
      %cst_34 = arith.constant 1.000000e+00 : f32
      %65 = vector.broadcast %cst_34 : f32 to vector<1x1xf32>
      %66 = arith.divf %65, %64 : vector<1x1xf32>
      %67 = vector.broadcast %66 : vector<1x1xf32> to vector<1x32xf32>
      %68 = arith.mulf %63, %67 : vector<1x32xf32>
      %c0_35 = arith.constant 0 : index
      %c0_36 = arith.constant 0 : index
      %69 = vector.load %arg6[%c0_35, %c0_36] : memref<32x2xf32, #tpu.memory_space<vmem>>, vector<32x2xf32>
      %cst_37 = arith.constant dense<0.000000e+00> : vector<1x2xf32>
      %70 = tpu.matmul %68, %69, %cst_37 {dimension_numbers = #tpu.dot_dimension_numbers<[1], [0], [0], [1], [0, 0, 1, 1], [], []>} : vector<1x32xf32>, vector<32x2xf32>, vector<1x2xf32> -> vector<1x2xf32>
      %c0_38 = arith.constant 0 : index
      %c0_39 = arith.constant 0 : index
      %71 = vector.load %arg7[%c0_38, %c0_39] : memref<1x2xf32, #tpu.memory_space<vmem>>, vector<1x2xf32>
      %72 = arith.addf %70, %71 : vector<1x2xf32>
      %c0_40 = arith.constant 0 : index
      %c0_41 = arith.constant 0 : index
      %73 = vector.load %arg8[%c0_40, %c0_41] : memref<1x2xf32, #tpu.memory_space<vmem>>, vector<1x2xf32>
      tpu.vector_store %arg8[%c0_40, %c0_41], %72 {strides = array<i32>} : memref<1x2xf32, #tpu.memory_space<vmem>>, vector<1x2xf32>,
    } else {
    }
    return
  }
  func.func @transform_0(%arg0: i32) -> (i32, i32) {
    %c0_i32 = arith.constant 0 : i32
    %c0_i32_0 = arith.constant 0 : i32
    return %arg0, %c0_i32 : i32, i32
  }
  func.func @transform_1(%arg0: i32) -> (i32, i32) {
    %c0_i32 = arith.constant 0 : i32
    %c0_i32_0 = arith.constant 0 : i32
    %c0_i32_1 = arith.constant 0 : i32
    return %c0_i32, %c0_i32_0 : i32, i32
  }
  func.func @transform_2(%arg0: i32) -> (i32, i32) {
    %c0_i32 = arith.constant 0 : i32
    %c0_i32_0 = arith.constant 0 : i32
    %c0_i32_1 = arith.constant 0 : i32
    return %c0_i32, %c0_i32_0 : i32, i32
  }
  func.func @transform_3(%arg0: i32) -> (i32, i32) {
    %c0_i32 = arith.constant 0 : i32
    %c0_i32_0 = arith.constant 0 : i32
    %c0_i32_1 = arith.constant 0 : i32
    return %c0_i32, %c0_i32_0 : i32, i32
  }
  func.func @transform_4(%arg0: i32) -> (i32, i32) {
    %c0_i32 = arith.constant 0 : i32
    %c0_i32_0 = arith.constant 0 : i32
    %c0_i32_1 = arith.constant 0 : i32
    return %c0_i32, %c0_i32_0 : i32, i32
  }
  func.func @transform_5(%arg0: i32) -> (i32, i32) {
    %c0_i32 = arith.constant 0 : i32
    %c0_i32_0 = arith.constant 0 : i32
    %c0_i32_1 = arith.constant 0 : i32
    return %c0_i32, %c0_i32_0 : i32, i32
  }
  func.func @transform_6(%arg0: i32) -> (i32, i32) {
    %c0_i32 = arith.constant 0 : i32
    %c0_i32_0 = arith.constant 0 : i32
    %c0_i32_1 = arith.constant 0 : i32
    return %c0_i32, %c0_i32_0 : i32, i32
  }
  func.func @transform_7(%arg0: i32) -> (i32, i32) {
    %c0_i32 = arith.constant 0 : i32
    %c0_i32_0 = arith.constant 0 : i32
    %c0_i32_1 = arith.constant 0 : i32
    return %c0_i32, %c0_i32_0 : i32, i32
  }
}

</mosaic_0001>

<llo_original>
// kernel: tpu_custom_call.1
$region0: #{tpu_custom_call.1}
  #allocation0 [shape = 'u32[]', space=smem, size = 0x4, offset = 0x4, fixed_abs, tag = 'smem constant byte address 0x4 - core index']
  #allocation1 [shape = 'u32[144,128]{1,0:T(1,128)}', space=vmem, size = 0x12000, scoped, tag = 'internal scratch']
  #allocation2 [shape = 'f32[1,1]{1,0:T(1,128)}', space=vmem, size = 0x200, scoped, tag = 'scratch operand']
  #allocation3 [shape = 'f32[1,1]{1,0:T(1,128)}', space=vmem, size = 0x200, scoped, tag = 'scratch operand']
  #allocation4 [shape = 'f32[1,32]{1,0:T(1,128)}', space=vmem, size = 0x200, scoped, tag = 'scratch operand']
  #allocation5 [shape = 'f32[1,1]{1,0:T(1,128)S(1)}', space=vmem, size = 0x200, scoped, tag = 'scoped memory for tpu_custom_call.1']
  %s0 = inlined_call_operand.vmem [shape: f32[50,32], index: 0, kind: input, shape index: {}]
  %s1 = inlined_call_operand.vmem [shape: f32[32,32], index: 1, kind: input, shape index: {}]
  %s2 = inlined_call_operand.vmem [shape: f32[1,32], index: 2, kind: input, shape index: {}]
  %s3 = inlined_call_operand.vmem [shape: f32[16,1], index: 3, kind: input, shape index: {}]
  %s4 = inlined_call_operand.<no memory space> [shape: f32[1,1], index: 4, kind: input, shape index: {}]
  %s5 = inlined_call_operand.vmem [shape: f32[32,2], index: 5, kind: input, shape index: {}]
  %s6 = inlined_call_operand.vmem [shape: f32[1,2], index: 6, kind: input, shape index: {}]
  %s7 = inlined_call_operand.hbm [shape: f32[1,2], index: 7, kind: output, shape index: {}]
  %s8 = sld [smem:[#allocation0]]
  $region69: #{tpu_custom_call.1} parent=0
    _
  %s10 = ssub.s32 1, %s8
  %s11 = scalar_select 0, %s10, %s8
  %v12 = vstv %s4
  %13 = vst [vmem:[#allocation5] sm:$0x1] %v12
  $region1: #{tpu_custom_call.1} parent=0
    #allocation6 [shape = 'u8[512]{0}', space=vmem, size = 0x400, scoped, tag = 'output window, operand 0, single buffered']
    #allocation7 [shape = 's32[2]{0}', space=sflag, size = 0x8, scoped, tag = 'scoped memory for tpu_custom_call.1']
    %14 = vsyncpa [#allocation7], 0
    loop: start=0, step=1, limit=6
    $region2: #{tpu_custom_call.1} parent=1 // loop_pre_header
      _
    $region3: #{tpu_custom_call.1} parent=1 // loop_header
      %s16 = sphi 0, %s20
      %p17 = scmp.ge.s32.totalorder %s16, 6
      %s26 = sphi 0, %s28
      %s29 = sphi 0, %s26
      %s30 = sphi 0, %s29
      %s46 = sphi 0, %s30
      %s50 = sphi 0, %s50
      %s52 = sphi 0, %s50
      %s53 = sphi 0, %s52
      %s67 = sphi 0, %s53
      %s71 = sphi 0, %s71
      %s73 = sphi 0, %s71
      %s74 = sphi 0, %s73
      %s88 = sphi 0, %s74
      %s92 = sphi 0, %s92
      %s94 = sphi 0, %s92
      %s95 = sphi 0, %s94
      %s109 = sphi 0, %s95
      %s113 = sphi 0, %s113
      %s115 = sphi 0, %s113
      %s116 = sphi 0, %s115
      %s130 = sphi 0, %s116
      %s134 = sphi 0, %s134
      %s136 = sphi 0, %s134
      %s137 = sphi 0, %s136
      %s151 = sphi 0, %s137
      %s155 = sphi 0, %s155
      %s157 = sphi 0, %s155
      %s158 = sphi 0, %s157
      %s172 = sphi 0, %s158
      %s176 = sphi 0, %s176
      %s178 = sphi 0, %s176
      %s179 = sphi 0, %s178
      %s193 = sphi 0, %s179
    $region4: #{tpu_custom_call.1} parent=1 // loop_header_branch
      %19 = sbr.rel (%p17) target = $region8
    $region5: #{tpu_custom_call.1} parent=1 // loop_body
      %s21 = ssub.s32 %s16, 1
      %s22 = ssub.s32 %s16, 2
      %s23 = sadd.s32 %s16, 1
      %s24 = ssub.s32 %s16, %s23
      %p25 = scmp.eq.s32.totalorder %s24, 0
      %s27 = sadd.s32 %s26, 1
      %s28 = scalar_select %p25, %s26, %s27
      %p31 = pneg %p25
      %p32 = scmp.eq.s32.totalorder %s16, 3
      %p33 = por %p31, %p32
      %p34 = scmp.ne.s32.totalorder %s26, %s29
      %p35 = scmp.eq.s32.totalorder %s16, 0
      %p36 = por %p34, %p35
      %p37 = scmp.ne.s32.totalorder %s26, %s29
      %p38 = scmp.eq.s32.totalorder %s21, 3
      %p39 = por %p37, %p38
      %p40 = scmp.ne.s32.totalorder %s29, %s30
      %p41 = scmp.eq.s32.totalorder %s21, 0
      %p42 = por %p40, %p41
      %p43 = scmp.ne.s32.totalorder %s29, %s30
      %p44 = scmp.eq.s32.totalorder %s22, 3
      %p45 = por %p43, %p44
      %p47 = scmp.ne.s32.totalorder %s30, %s46
      %p48 = scmp.eq.s32.totalorder %s22, 0
      %p49 = por %p47, %p48
      %s51 = sadd.s32 %s50, 1
      %p54 = scmp.eq.s32.totalorder %s16, 3
      %p55 = scmp.ne.s32.totalorder %s50, %s52
      %p56 = scmp.eq.s32.totalorder %s16, 0
      %p57 = por %p55, %p56
      %p58 = scmp.ne.s32.totalorder %s50, %s52
      %p59 = scmp.eq.s32.totalorder %s21, 3
      %p60 = por %p58, %p59
      %p61 = scmp.ne.s32.totalorder %s52, %s53
      %p62 = scmp.eq.s32.totalorder %s21, 0
      %p63 = por %p61, %p62
      %p64 = scmp.ne.s32.totalorder %s52, %s53
      %p65 = scmp.eq.s32.totalorder %s22, 3
      %p66 = por %p64, %p65
      %p68 = scmp.ne.s32.totalorder %s53, %s67
      %p69 = scmp.eq.s32.totalorder %s22, 0
      %p70 = por %p68, %p69
      %s72 = sadd.s32 %s71, 1
      %p75 = scmp.eq.s32.totalorder %s16, 3
      %p76 = scmp.ne.s32.totalorder %s71, %s73
      %p77 = scmp.eq.s32.totalorder %s16, 0
      %p78 = por %p76, %p77
      %p79 = scmp.ne.s32.totalorder %s71, %s73
      %p80 = scmp.eq.s32.totalorder %s21, 3
      %p81 = por %p79, %p80
      %p82 = scmp.ne.s32.totalorder %s73, %s74
      %p83 = scmp.eq.s32.totalorder %s21, 0
      %p84 = por %p82, %p83
      %p85 = scmp.ne.s32.totalorder %s73, %s74
      %p86 = scmp.eq.s32.totalorder %s22, 3
      %p87 = por %p85, %p86
      %p89 = scmp.ne.s32.totalorder %s74, %s88
      %p90 = scmp.eq.s32.totalorder %s22, 0
      %p91 = por %p89, %p90
      %s93 = sadd.s32 %s92, 1
      %p96 = scmp.eq.s32.totalorder %s16, 3
      %p97 = scmp.ne.s32.totalorder %s92, %s94
      %p98 = scmp.eq.s32.totalorder %s16, 0
      %p99 = por %p97, %p98
      %p100 = scmp.ne.s32.totalorder %s92, %s94
      %p101 = scmp.eq.s32.totalorder %s21, 3
      %p102 = por %p100, %p101
      %p103 = scmp.ne.s32.totalorder %s94, %s95
      %p104 = scmp.eq.s32.totalorder %s21, 0
      %p105 = por %p103, %p104
      %p106 = scmp.ne.s32.totalorder %s94, %s95
      %p107 = scmp.eq.s32.totalorder %s22, 3
      %p108 = por %p106, %p107
      %p110 = scmp.ne.s32.totalorder %s95, %s109
      %p111 = scmp.eq.s32.totalorder %s22, 0
      %p112 = por %p110, %p111
      %s114 = sadd.s32 %s113, 1
      %p117 = scmp.eq.s32.totalorder %s16, 3
      %p118 = scmp.ne.s32.totalorder %s113, %s115
      %p119 = scmp.eq.s32.totalorder %s16, 0
      %p120 = por %p118, %p119
      %p121 = scmp.ne.s32.totalorder %s113, %s115
      %p122 = scmp.eq.s32.totalorder %s21, 3
      %p123 = por %p121, %p122
      %p124 = scmp.ne.s32.totalorder %s115, %s116
      %p125 = scmp.eq.s32.totalorder %s21, 0
      %p126 = por %p124, %p125
      %p127 = scmp.ne.s32.totalorder %s115, %s116
      %p128 = scmp.eq.s32.totalorder %s22, 3
      %p129 = por %p127, %p128
      %p131 = scmp.ne.s32.totalorder %s116, %s130
      %p132 = scmp.eq.s32.totalorder %s22, 0
      %p133 = por %p131, %p132
      %s135 = sadd.s32 %s134, 1
      %p138 = scmp.eq.s32.totalorder %s16, 3
      %p139 = scmp.ne.s32.totalorder %s134, %s136
      %p140 = scmp.eq.s32.totalorder %s16, 0
      %p141 = por %p139, %p140
      %p142 = scmp.ne.s32.totalorder %s134, %s136
      %p143 = scmp.eq.s32.totalorder %s21, 3
      %p144 = por %p142, %p143
      %p145 = scmp.ne.s32.totalorder %s136, %s137
      %p146 = scmp.eq.s32.totalorder %s21, 0
      %p147 = por %p145, %p146
      %p148 = scmp.ne.s32.totalorder %s136, %s137
      %p149 = scmp.eq.s32.totalorder %s22, 3
      %p150 = por %p148, %p149
      %p152 = scmp.ne.s32.totalorder %s137, %s151
      %p153 = scmp.eq.s32.totalorder %s22, 0
      %p154 = por %p152, %p153
      %s156 = sadd.s32 %s155, 1
      %p159 = scmp.eq.s32.totalorder %s16, 3
      %p160 = scmp.ne.s32.totalorder %s155, %s157
      %p161 = scmp.eq.s32.totalorder %s16, 0
      %p162 = por %p160, %p161
      %p163 = scmp.ne.s32.totalorder %s155, %s157
      %p164 = scmp.eq.s32.totalorder %s21, 3
      %p165 = por %p163, %p164
      %p166 = scmp.ne.s32.totalorder %s157, %s158
      %p167 = scmp.eq.s32.totalorder %s21, 0
      %p168 = por %p166, %p167
      %p169 = scmp.ne.s32.totalorder %s157, %s158
      %p170 = scmp.eq.s32.totalorder %s22, 3
      %p171 = por %p169, %p170
      %p173 = scmp.ne.s32.totalorder %s158, %s172
      %p174 = scmp.eq.s32.totalorder %s22, 0
      %p175 = por %p173, %p174
      %s177 = sadd.s32 %s176, 1
      %p180 = scmp.eq.s32.totalorder %s16, 3
      %p181 = scmp.ne.s32.totalorder %s176, %s178
      %p182 = scmp.eq.s32.totalorder %s16, 0
      %p183 = por %p181, %p182
      %p184 = scmp.ne.s32.totalorder %s176, %s178
      %p185 = scmp.eq.s32.totalorder %s21, 3
      %p186 = por %p184, %p185
      %p187 = scmp.ne.s32.totalorder %s178, %s179
      %p188 = scmp.eq.s32.totalorder %s21, 0
      %p189 = por %p187, %p188
      %p190 = scmp.ne.s32.totalorder %s178, %s179
      %p191 = scmp.eq.s32.totalorder %s22, 3
      %p192 = por %p190, %p191
      %p194 = scmp.ne.s32.totalorder %s179, %s193
      %p195 = scmp.eq.s32.totalorder %s22, 0
      %p196 = por %p194, %p195
      %p197 = scmp.le.s32.totalorder 1, %s16
      %p198 = scmp.lt.s32.totalorder %s16, 5
      %p199 = pnand %p197, %p198
      %p200 = pneg %p199
      // Predicated region
      $region9: #{tpu_custom_call.1} parent=5 // pred_check
        _
      $region10: #{tpu_custom_call.1} parent=5 // pred_check_branch
        %202 = sbr.rel (%p199) target = $region12
      $region11: #{tpu_custom_call.1} parent=5 // pred_region
        %s203 = ssub.s32 %s16, 1
        // Predicated region
        $region13: #{tpu_custom_call.1} parent=11 // pred_check
          %p204 = pneg %p63
        $region14: #{tpu_custom_call.1} parent=11 // pred_check_branch
          %206 = sbr.rel (%p204) target = $region16
        $region15: #{tpu_custom_call.1} parent=11 // pred_region
          _
        $region16: #{tpu_custom_call.1} parent=11 // pred_fallthru
          _
        // Predicated region
        $region17: #{tpu_custom_call.1} parent=11 // pred_check
          %p207 = pneg %p84
        $region18: #{tpu_custom_call.1} parent=11 // pred_check_branch
          %209 = sbr.rel (%p207) target = $region20
        $region19: #{tpu_custom_call.1} parent=11 // pred_region
          _
        $region20: #{tpu_custom_call.1} parent=11 // pred_fallthru
          _
        // Predicated region
        $region21: #{tpu_custom_call.1} parent=11 // pred_check
          %p210 = pneg %p105
        $region22: #{tpu_custom_call.1} parent=11 // pred_check_branch
          %212 = sbr.rel (%p210) target = $region24
        $region23: #{tpu_custom_call.1} parent=11 // pred_region
          _
        $region24: #{tpu_custom_call.1} parent=11 // pred_fallthru
          _
        // Predicated region
        $region25: #{tpu_custom_call.1} parent=11 // pred_check
          %p213 = pneg %p126
        $region26: #{tpu_custom_call.1} parent=11 // pred_check_branch
          %215 = sbr.rel (%p213) target = $region28
        $region27: #{tpu_custom_call.1} parent=11 // pred_region
          _
        $region28: #{tpu_custom_call.1} parent=11 // pred_fallthru
          _
        // Predicated region
        $region29: #{tpu_custom_call.1} parent=11 // pred_check
          %p216 = pneg %p147
        $region30: #{tpu_custom_call.1} parent=11 // pred_check_branch
          %218 = sbr.rel (%p216) target = $region32
        $region31: #{tpu_custom_call.1} parent=11 // pred_region
          _
        $region32: #{tpu_custom_call.1} parent=11 // pred_fallthru
          _
        // Predicated region
        $region33: #{tpu_custom_call.1} parent=11 // pred_check
          %p219 = pneg %p168
        $region34: #{tpu_custom_call.1} parent=11 // pred_check_branch
          %221 = sbr.rel (%p219) target = $region36
        $region35: #{tpu_custom_call.1} parent=11 // pred_region
          _
        $region36: #{tpu_custom_call.1} parent=11 // pred_fallthru
          _
      $region12: #{tpu_custom_call.1} parent=5 // pred_fallthru
        _
      %p222 = scmp.lt.s32.totalorder %s16, 4
      // Predicated region
      $region37: #{tpu_custom_call.1} parent=5 // pred_check
        %p223 = pneg %p222
      $region38: #{tpu_custom_call.1} parent=5 // pred_check_branch
        %225 = sbr.rel (%p223) target = $region40
      $region39: #{tpu_custom_call.1} parent=5 // pred_region
        // Predicated region
        $region41: #{tpu_custom_call.1} parent=39 // pred_check
          %p226 = pneg %p36
        $region42: #{tpu_custom_call.1} parent=39 // pred_check_branch
          %228 = sbr.rel (%p226) target = $region44
        $region43: #{tpu_custom_call.1} parent=39 // pred_region
          %s229 = smul.u32 2, %s16
          %s230 = ssub.s32 7, %s229
          %p231 = scmp.lt.s32.totalorder %s230, 2
          %s232 = scalar_select %p231, %s230, 2
          %s233 = smul.u32 128, %s232
          %p234 = scmp.lt.s32.totalorder %s229, 6
          %s235 = scalar_select %p234, %s229, 6
          %s236 = smul.addr %s235, 8
          %s237 = scalar_lea.vmem %s0, %s236
          %s238 = smul.u32 2, %s16
          %s239 = ssub.s32 7, %s238
          %p240 = scmp.lt.s32.totalorder %s239, 2
          %s241 = scalar_select %p240, %s239, 2
          %s242 = smul.u32 128, %s241
        $region44: #{tpu_custom_call.1} parent=39 // pred_fallthru
          _
      $region40: #{tpu_custom_call.1} parent=5 // pred_fallthru
        _
      %p243 = scmp.le.s32.totalorder 1, %s16
      %p244 = scmp.lt.s32.totalorder %s16, 5
      %p245 = pnand %p243, %p244
      %p246 = pneg %p245
      // Predicated region
      $region45: #{tpu_custom_call.1} parent=5 // pred_check
        _
      $region46: #{tpu_custom_call.1} parent=5 // pred_check_branch
        %248 = sbr.rel (%p245) target = $region48
      $region47: #{tpu_custom_call.1} parent=5 // pred_region
        %s249 = ssub.s32 %s16, 1
        %s250 = smul.u32 2, %s21
        %s251 = ssub.s32 7, %s250
        %p252 = scmp.lt.s32.totalorder %s251, 2
        %s253 = scalar_select %p252, %s251, 2
        %s254 = smul.u32 128, %s253
        %p255 = scmp.lt.s32.totalorder %s250, 6
        %s256 = scalar_select %p255, %s250, 6
        %s257 = smul.addr %s256, 8
        %s258 = scalar_lea.vmem %s0, %s257
        %p259 = pneg %p42
        %p260 = pneg %p39
        %p261 = pneg %p63
        %p262 = pneg %p60
        %p263 = pneg %p84
        %p264 = pneg %p81
        %p265 = pneg %p105
        %p266 = pneg %p102
        %p267 = pneg %p126
        %p268 = pneg %p123
        %p269 = pneg %p147
        %p270 = pneg %p144
        %p271 = pneg %p168
        %p272 = pneg %p165
        %p273 = pneg %p189
        %p274 = pneg %p186
        %s275 = smul.u32 2, %s21
        %s276 = ssub.s32 7, %s275
        %p277 = scmp.lt.s32.totalorder %s276, 2
        %s278 = scalar_select %p277, %s276, 2
        %s279 = smul.u32 128, %s278
        %p280 = scmp.lt.s32.totalorder %s275, 6
        %s281 = scalar_select %p280, %s275, 6
        %s282 = smul.addr %s281, 8
        %s283 = scalar_lea.vmem %s0, %s282
        %s284 = smul.u32 2, %s21
        %s285 = ssub.s32 7, %s284
        %p286 = scmp.lt.s32.totalorder %s285, 2
        %s287 = scalar_select %p286, %s285, 2
        %s288 = smul.u32 128, %s287
        %p289 = scmp.eq.s32.totalorder %s21, 0
        // Predicated region
        $region49: #{tpu_custom_call.1} parent=47 // pred_check
          %p290 = pneg %p289
        $region50: #{tpu_custom_call.1} parent=47 // pred_check_branch
          %292 = sbr.rel (%p290) target = $region52
        $region51: #{tpu_custom_call.1} parent=47 // pred_region
          %vm293 = vcmask 0
          %294 = vst.msk [vmem:[#allocation2] sm:$0x1] %vm293, -1e+30
          %295 = vst.msk [vmem:[#allocation3] sm:$0x1] %vm293, 0.0
          %vm296 = vcmask 253952
          %297 = vst.msk [vmem:[#allocation4] sm:$0x1] %vm296, 0.0
        $region52: #{tpu_custom_call.1} parent=47 // pred_fallthru
          _
        %v298 = vld [vmem:[%s283] sm:$0xff]
        %v299 = vld [vmem:[%s283 + $0x8] sm:$0xff]
        %v300 = vlaneseq
        %v301 = vshrl.u32 %v300, 7
        %v302 = vadd.s32 %v301, 8
        %s303 = smul.u32 %s21, 16
        %v304 = vstv %s303
        %v305 = vadd.s32 %v301, %v304
        %v306 = vadd.s32 %v302, %v304
        %vm307 = vcmp.lt.s32.totalorder %v305, 50
        %vm308 = vcmp.lt.s32.totalorder %v306, 50
        %v309 = vsel %vm307, 1, 0
        %v310 = vsel %vm308, 1, 0
        %vm311 = vcmp.eq.s32.totalorder %v309, 1
        %vm312 = vcmp.eq.s32.totalorder %v310, 1
        %v313 = vsel %vm311, %v298, 0.0
        %v314 = vsel %vm312, %v299, 0.0
        %v315 = vld [vmem:[%s1] sm:$0xff]
        %v316 = vld [vmem:[%s1 + $0x8] sm:$0xff]
        %v317 = vld [vmem:[%s1 + $0x10] sm:$0xff]
        %v318 = vld [vmem:[%s1 + $0x18] sm:$0xff]
        %v319 = vld [vmem:[%s2] sm:$0x1]
        %v321 = vlaneseq
        %v322 = vshrl.u32 %v321, 7
        %v323 = vsub.s32 0, %v322
        %v324 = vrot.slane %v319, %v323
        %vm326 = vcmask 261120
        %v328 = vsel %vm326, %v313, 0
        %v331 = vsel %vm326, %v314, 0
        %333 = vmatprep.subr.mxu0 0.0
        %334 = vmatpush1.msra.mxu0 0.0
        %335 = vmatprep.subr.mxu0 0.0
        %336 = vmatpush1.msra.mxu0 0.0
        %337 = vmatprep.subr.mxu0 0.0
        %338 = vmatpush1.msra.mxu0 0.0
        %339 = vmatprep.subr.mxu0 0.0
        %340 = vmatpush1.msra.mxu0 0.0
        %341 = vmatprep.subr.mxu0 0.0
        %342 = vmatpush1.msra.mxu0 0.0
        %343 = vmatprep.subr.mxu0 0.0
        %344 = vmatpush1.msra.mxu0 0.0
        %345 = vmatprep.subr.mxu0 0.0
        %346 = vmatpush1.msra.mxu0 0.0
        %347 = vmatprep.subr.mxu0 0.0
        %348 = vmatpush1.msra.mxu0 0.0
        %349 = vmatprep.subr.mxu0 0.0
        %350 = vmatpush1.msra.mxu0 0.0
        %351 = vmatprep.subr.mxu0 0.0
        %352 = vmatpush1.msra.mxu0 0.0
        %353 = vmatprep.subr.mxu0 0.0
        %354 = vmatpush1.msra.mxu0 0.0
        %355 = vmatprep.subr.mxu0 0.0
        %356 = vmatpush1.msra.mxu0 0.0
        %357 = vmatprep.subr.mxu0 0.0
        %358 = vmatpush1.msra.mxu0 %v318
        %359 = vmatprep.subr.mxu0 0.0
        %360 = vmatpush1.msra.mxu0 %v317
        %361 = vmatprep.subr.mxu0 0.0
        %362 = vmatpush1.msra.mxu0 %v316
        %363 = vmatprep.subr.mxu0 0.0
        %364 = vmatpush1.msra.mxu0 %v315
        %365 = vmatprep.subr.mxu0 0.0
        %366 = vmatpush2.msra.mxu0 0.0
        %367 = vmatprep.subr.mxu0 0.0
        %368 = vmatpush2.msra.mxu0 0.0
        %369 = vmatprep.subr.mxu0 0.0
        %370 = vmatpush2.msra.mxu0 0.0
        %371 = vmatprep.subr.mxu0 0.0
        %372 = vmatpush2.msra.mxu0 0.0
        %373 = vmatprep.subr.mxu0 0.0
        %374 = vmatpush2.msra.mxu0 0.0
        %375 = vmatprep.subr.mxu0 0.0
        %376 = vmatpush2.msra.mxu0 0.0
        %377 = vmatprep.subr.mxu0 0.0
        %378 = vmatpush2.msra.mxu0 0.0
        %379 = vmatprep.subr.mxu0 0.0
        %380 = vmatpush2.msra.mxu0 0.0
        %381 = vmatprep.subr.mxu0 0.0
        %382 = vmatpush2.msra.mxu0 0.0
        %383 = vmatprep.subr.mxu0 0.0
        %384 = vmatpush2.msra.mxu0 0.0
        %385 = vmatprep.subr.mxu0 0.0
        %386 = vmatpush2.msra.mxu0 0.0
        %387 = vmatprep.subr.mxu0 0.0
        %388 = vmatpush2.msra.mxu0 0.0
        %389 = vmatprep.subr.mxu0 0.0
        %390 = vmatpush2.msra.mxu0 0.0
        %391 = vmatprep.subr.mxu0 0.0
        %392 = vmatpush2.msra.mxu0 0.0
        %393 = vmatprep.subr.mxu0 0.0
        %394 = vmatpush2.msra.mxu0 0.0
        %395 = vmatprep.subr.mxu0 0.0
        %396 = vmatpush2.msra.mxu0 0.0
        %397 = vmatprep.mubr.f32.mxu0 0.0
        %398 = vmatmul.mubr.f32.gmra.mxu0 %v328
        %v399 = vpop.f32.mrf.mxu0
        %v400 = vadd.f32 %v324, %v399
        %v401 = vpop.f32.mrf.mxu0
        %402 = vmatprep.mubr.f32.mxu0 0.0
        %403 = vmatmul.mubr.f32.gmra.mxu0 %v331
        %v404 = vpop.f32.mrf.mxu0
        %v405 = vadd.f32 %v324, %v404
        %v406 = vpop.f32.mrf.mxu0
        %407 = vdwg.mxu0
        %v408 = vtanh.pop %v400
        %v409 = vtanh.pop %v405
        %v410 = vxor.u32 %v400, 2147483648
        %v411 = vxor.u32 %v405, 2147483648
        %v412 = vmul.f32 %v410, 1.442695
        %v413 = vpow.pop %v412
        %v414 = vmul.f32 %v411, 1.442695
        %v415 = vpow.pop %v414
        %v416 = vadd.f32 %v413, 1.0
        %v417 = vadd.f32 %v415, 1.0
        %v418 = vrcp.pop %v416
        %v419 = vmul.f32 1.0, %v418
        %v420 = vrcp.pop %v417
        %v421 = vmul.f32 1.0, %v420
        %424 = vrot.lane.b32.xlu0 %v419, 112
        %v425 = vpop.permute.xlu0 %424
        %426 = vrot.lane.b32.xlu0 %v421, 112
        %v427 = vpop.permute.xlu0 %426
        %v430 = vmul.f32 %v408, %v425
        %v431 = vmul.f32 %v409, %v427
        %v432 = vld [vmem:[%s3] sm:$0xff]
        %v433 = vld [vmem:[%s3 + $0x8] sm:$0xff]
        %v434 = vld [vmem:[#allocation5] sm:$0x1]
        %v436 = vlaneseq
        %v437 = vshrl.u32 %v436, 7
        %v438 = vsub.s32 0, %v437
        %v439 = vrot.slane %v434, %v438
        %vm441 = vcmask 130048
        %v443 = vsel %vm441, %v430, 0
        %v446 = vsel %vm441, %v431, 0
        %448 = vmatprep.subr.mxu0 0.0
        %449 = vmatpush1.msra.mxu0 0.0
        %450 = vmatprep.subr.mxu0 0.0
        %451 = vmatpush1.msra.mxu0 0.0
        %452 = vmatprep.subr.mxu0 0.0
        %453 = vmatpush1.msra.mxu0 0.0
        %454 = vmatprep.subr.mxu0 0.0
        %455 = vmatpush1.msra.mxu0 0.0
        %456 = vmatprep.subr.mxu0 0.0
        %457 = vmatpush1.msra.mxu0 0.0
        %458 = vmatprep.subr.mxu0 0.0
        %459 = vmatpush1.msra.mxu0 0.0
        %460 = vmatprep.subr.mxu0 0.0
        %461 = vmatpush1.msra.mxu0 0.0
        %462 = vmatprep.subr.mxu0 0.0
        %463 = vmatpush1.msra.mxu0 0.0
        %464 = vmatprep.subr.mxu0 0.0
        %465 = vmatpush1.msra.mxu0 0.0
        %466 = vmatprep.subr.mxu0 0.0
        %467 = vmatpush1.msra.mxu0 0.0
        %468 = vmatprep.subr.mxu0 0.0
        %469 = vmatpush1.msra.mxu0 0.0
        %470 = vmatprep.subr.mxu0 0.0
        %471 = vmatpush1.msra.mxu0 0.0
        %472 = vmatprep.subr.mxu0 0.0
        %473 = vmatpush1.msra.mxu0 0.0
        %474 = vmatprep.subr.mxu0 0.0
        %475 = vmatpush1.msra.mxu0 0.0
        %476 = vmatprep.subr.mxu0 0.0
        %477 = vmatpush1.msra.mxu0 %v433
        %478 = vmatprep.subr.mxu0 0.0
        %479 = vmatpush1.msra.mxu0 %v432
        %480 = vmatprep.subr.mxu0 0.0
        %481 = vmatpush2.msra.mxu0 0.0
        %482 = vmatprep.subr.mxu0 0.0
        %483 = vmatpush2.msra.mxu0 0.0
        %484 = vmatprep.subr.mxu0 0.0
        %485 = vmatpush2.msra.mxu0 0.0
        %486 = vmatprep.subr.mxu0 0.0
        %487 = vmatpush2.msra.mxu0 0.0
        %488 = vmatprep.subr.mxu0 0.0
        %489 = vmatpush2.msra.mxu0 0.0
        %490 = vmatprep.subr.mxu0 0.0
        %491 = vmatpush2.msra.mxu0 0.0
        %492 = vmatprep.subr.mxu0 0.0
        %493 = vmatpush2.msra.mxu0 0.0
        %494 = vmatprep.subr.mxu0 0.0
        %495 = vmatpush2.msra.mxu0 0.0
        %496 = vmatprep.subr.mxu0 0.0
        %497 = vmatpush2.msra.mxu0 0.0
        %498 = vmatprep.subr.mxu0 0.0
        %499 = vmatpush2.msra.mxu0 0.0
        %500 = vmatprep.subr.mxu0 0.0
        %501 = vmatpush2.msra.mxu0 0.0
        %502 = vmatprep.subr.mxu0 0.0
        %503 = vmatpush2.msra.mxu0 0.0
        %504 = vmatprep.subr.mxu0 0.0
        %505 = vmatpush2.msra.mxu0 0.0
        %506 = vmatprep.subr.mxu0 0.0
        %507 = vmatpush2.msra.mxu0 0.0
        %508 = vmatprep.subr.mxu0 0.0
        %509 = vmatpush2.msra.mxu0 0.0
        %510 = vmatprep.subr.mxu0 0.0
        %511 = vmatpush2.msra.mxu0 0.0
        %512 = vmatprep.mubr.f32.mxu0 0.0
        %513 = vmatmul.mubr.f32.gmra.mxu0 %v443
        %v514 = vpop.f32.mrf.mxu0
        %v515 = vadd.f32 %v439, %v514
        %v516 = vpop.f32.mrf.mxu0
        %517 = vmatprep.mubr.f32.mxu0 0.0
        %518 = vmatmul.mubr.f32.gmra.mxu0 %v446
        %v519 = vpop.f32.mrf.mxu0
        %v520 = vadd.f32 %v439, %v519
        %v521 = vpop.f32.mrf.mxu0
        %522 = vdwg.mxu0
        %v523 = vsel %vm307, %v515, -1e+30
        %v524 = vsel %vm308, %v520, -1e+30
        %v525 = vld [vmem:[#allocation2] sm:$0x1]
        %vm526 = vcmask 7168
        %v527 = vsel %vm526, %v523, -inf
        %v528 = vsel %vm526, %v524, -inf
        %v529 = vmax.f32 %v527, %v528
        %v530 = vrot.slane %v529, 4
        %v531 = vmax.f32 %v529, %v530
        %v532 = vrot.slane %v531, 2
        %v533 = vmax.f32 %v531, %v532
        %v534 = vrot.slane %v533, 1
        %v535 = vmax.f32 %v533, %v534
        %v536 = vmax.f32 %v525, %v535
        %v537 = vsub.f32 %v525, %v536
        %v538 = vmul.f32 %v537, 1.442695
        %v539 = vpow.pop %v538
        %v541 = vlaneseq
        %v542 = vshrl.u32 %v541, 7
        %v543 = vsub.s32 0, %v542
        %v544 = vrot.slane %v536, %v543
        %v546 = vsub.f32 %v523, %v544
        %v547 = vsub.f32 %v524, %v544
        %v548 = vmul.f32 %v546, 1.442695
        %v549 = vpow.pop %v548
        %v550 = vmul.f32 %v547, 1.442695
        %v551 = vpow.pop %v550
        %v552 = vld [vmem:[#allocation3] sm:$0x1]
        %v553 = vmul.f32 %v539, %v552
        %v554 = vsel %vm526, %v549, 0.0
        %v555 = vsel %vm526, %v551, 0.0
        %v556 = vadd.f32 %v554, %v555
        %v557 = vrot.slane %v556, 4
        %v558 = vadd.f32 %v556, %v557
        %v559 = vrot.slane %v558, 2
        %v560 = vadd.f32 %v558, %v559
        %v561 = vrot.slane %v560, 1
        %v562 = vadd.f32 %v560, %v561
        %v563 = vadd.f32 %v553, %v562
        %vm564 = vcmask 0
        %565 = vst.msk [vmem:[#allocation3] sm:$0x1] %vm564, %v563
        %567 = vset.pattern.permute.xlu0 0
        %568 = vperm.xlu0 %567, %v549
        %v569 = vpop.permute.xlu0 %568
        %572 = vset.pattern.permute.xlu0 0
        %573 = vperm.xlu0 %572, %v551
        %v574 = vpop.permute.xlu0 %573
        %v576 = vmul.f32 %v569, %v313
        %v577 = vmul.f32 %v574, %v314
        %v578 = vsel %vm326, %v576, 0.0
        %v579 = vsel %vm326, %v577, 0.0
        %v580 = vadd.f32 %v578, %v579
        %v581 = vrot.slane %v580, 4
        %v582 = vadd.f32 %v580, %v581
        %v583 = vrot.slane %v582, 2
        %v584 = vadd.f32 %v582, %v583
        %v585 = vrot.slane %v584, 1
        %v586 = vadd.f32 %v584, %v585
        %v587 = vld [vmem:[#allocation4] sm:$0x1]
        %589 = vset.pattern.permute.xlu0 0
        %590 = vperm.xlu0 %589, %v539
        %v591 = vpop.permute.xlu0 %590
        %v593 = vlaneseq
        %v594 = vshrl.u32 %v593, 7
        %v595 = vsub.s32 0, %v594
        %v596 = vrot.slane %v591, %v595
        %v597 = vmul.f32 %v596, %v587
        %v598 = vadd.f32 %v597, %v586
        %vm599 = vcmask 253952
        %600 = vst.msk [vmem:[#allocation4] sm:$0x1] %vm599, %v598
        %601 = vst.msk [vmem:[#allocation2] sm:$0x1] %vm564, %v536
        %p602 = scmp.eq.s32.totalorder %s21, 3
        // Predicated region
        $region53: #{tpu_custom_call.1} parent=47 // pred_check
          %p603 = pneg %p602
        $region54: #{tpu_custom_call.1} parent=47 // pred_check_branch
          %605 = sbr.rel (%p603) target = $region56
        $region55: #{tpu_custom_call.1} parent=47 // pred_region
          %v606 = vld [vmem:[#allocation4] sm:$0x1]
          %v607 = vld [vmem:[#allocation3] sm:$0x1]
          %v608 = vrcp.pop %v607
          %v609 = vmul.f32 1.0, %v608
          %611 = vset.pattern.permute.xlu0 0
          %612 = vperm.xlu0 %611, %v609
          %v613 = vpop.permute.xlu0 %612
          %v615 = vlaneseq
          %v616 = vshrl.u32 %v615, 7
          %v617 = vsub.s32 0, %v616
          %v618 = vrot.slane %v613, %v617
          %v619 = vmul.f32 %v606, %v618
          %v620 = vld [vmem:[%s5] sm:$0xff]
          %v621 = vld [vmem:[%s5 + $0x8] sm:$0xff]
          %v622 = vld [vmem:[%s5 + $0x10] sm:$0xff]
          %v623 = vld [vmem:[%s5 + $0x18] sm:$0xff]
          %v624 = vld [vmem:[%s6] sm:$0x1]
          %v626 = vsel %vm326, %v619, 0
          %628 = vmatprep.subr.mxu0 0.0
          %629 = vmatpush1.msra.mxu0 0.0
          %630 = vmatprep.subr.mxu0 0.0
          %631 = vmatpush1.msra.mxu0 0.0
          %632 = vmatprep.subr.mxu0 0.0
          %633 = vmatpush1.msra.mxu0 0.0
          %634 = vmatprep.subr.mxu0 0.0
          %635 = vmatpush1.msra.mxu0 0.0
          %636 = vmatprep.subr.mxu0 0.0
          %637 = vmatpush1.msra.mxu0 0.0
          %638 = vmatprep.subr.mxu0 0.0
          %639 = vmatpush1.msra.mxu0 0.0
          %640 = vmatprep.subr.mxu0 0.0
          %641 = vmatpush1.msra.mxu0 0.0
          %642 = vmatprep.subr.mxu0 0.0
          %643 = vmatpush1.msra.mxu0 0.0
          %644 = vmatprep.subr.mxu0 0.0
          %645 = vmatpush1.msra.mxu0 0.0
          %646 = vmatprep.subr.mxu0 0.0
          %647 = vmatpush1.msra.mxu0 0.0
          %648 = vmatprep.subr.mxu0 0.0
          %649 = vmatpush1.msra.mxu0 0.0
          %650 = vmatprep.subr.mxu0 0.0
          %651 = vmatpush1.msra.mxu0 0.0
          %652 = vmatprep.subr.mxu0 0.0
          %653 = vmatpush1.msra.mxu0 %v623
          %654 = vmatprep.subr.mxu0 0.0
          %655 = vmatpush1.msra.mxu0 %v622
          %656 = vmatprep.subr.mxu0 0.0
          %657 = vmatpush1.msra.mxu0 %v621
          %658 = vmatprep.subr.mxu0 0.0
          %659 = vmatpush1.msra.mxu0 %v620
          %660 = vmatprep.subr.mxu0 0.0
          %661 = vmatpush2.msra.mxu0 0.0
          %662 = vmatprep.subr.mxu0 0.0
          %663 = vmatpush2.msra.mxu0 0.0
          %664 = vmatprep.subr.mxu0 0.0
          %665 = vmatpush2.msra.mxu0 0.0
          %666 = vmatprep.subr.mxu0 0.0
          %667 = vmatpush2.msra.mxu0 0.0
          %668 = vmatprep.subr.mxu0 0.0
          %669 = vmatpush2.msra.mxu0 0.0
          %670 = vmatprep.subr.mxu0 0.0
          %671 = vmatpush2.msra.mxu0 0.0
          %672 = vmatprep.subr.mxu0 0.0
          %673 = vmatpush2.msra.mxu0 0.0
          %674 = vmatprep.subr.mxu0 0.0
          %675 = vmatpush2.msra.mxu0 0.0
          %676 = vmatprep.subr.mxu0 0.0
          %677 = vmatpush2.msra.mxu0 0.0
          %678 = vmatprep.subr.mxu0 0.0
          %679 = vmatpush2.msra.mxu0 0.0
          %680 = vmatprep.subr.mxu0 0.0
          %681 = vmatpush2.msra.mxu0 0.0
          %682 = vmatprep.subr.mxu0 0.0
          %683 = vmatpush2.msra.mxu0 0.0
          %684 = vmatprep.subr.mxu0 0.0
          %685 = vmatpush2.msra.mxu0 0.0
          %686 = vmatprep.subr.mxu0 0.0
          %687 = vmatpush2.msra.mxu0 0.0
          %688 = vmatprep.subr.mxu0 0.0
          %689 = vmatpush2.msra.mxu0 0.0
          %690 = vmatprep.subr.mxu0 0.0
          %691 = vmatpush2.msra.mxu0 0.0
          %692 = vmatprep.mubr.f32.mxu0 0.0
          %693 = vmatmul.mubr.f32.gmra.mxu0 %v626
          %v694 = vpop.f32.mrf.mxu0
          %v695 = vadd.f32 %v624, %v694
          %v696 = vpop.f32.mrf.mxu0
          %697 = vdwg.mxu0
          %vm698 = vcmask 8192
          %699 = vst.msk [vmem:[#allocation6] sm:$0x1] %vm698, %v695
        $region56: #{tpu_custom_call.1} parent=47 // pred_fallthru
          _
        // Predicated region
        $region57: #{tpu_custom_call.1} parent=47 // pred_check
          %p700 = pneg %p186
        $region58: #{tpu_custom_call.1} parent=47 // pred_check_branch
          %702 = sbr.rel (%p700) target = $region60
        $region59: #{tpu_custom_call.1} parent=47 // pred_region
          %s704 = ssub.s32 16, 16
          %705 = vsyncadd [#allocation7], %s704
          %s707 = sshll.u32 [#allocation6], 4
          %s708 = int_to_ptr.vmem [resolvable:$true] %s707
          %710 = dma.vmem_to_hbm [thread:$0]  %s708, 16, %s7, [#allocation7]
        $region60: #{tpu_custom_call.1} parent=47 // pred_fallthru
          _
        // Predicated region
        $region61: #{tpu_custom_call.1} parent=47 // pred_check
          %p711 = pneg %p186
        $region62: #{tpu_custom_call.1} parent=47 // pred_check_branch
          %713 = sbr.rel (%p711) target = $region64
        $region63: #{tpu_custom_call.1} parent=47 // pred_region
          %714 = dma.done [#allocation7], 16
        $region64: #{tpu_custom_call.1} parent=47 // pred_fallthru
          _
      $region48: #{tpu_custom_call.1} parent=5 // pred_fallthru
        _
      %p715 = scmp.le.s32.totalorder 2, %s16
      // Predicated region
      $region65: #{tpu_custom_call.1} parent=5 // pred_check
        %p716 = pneg %p715
      $region66: #{tpu_custom_call.1} parent=5 // pred_check_branch
        %718 = sbr.rel (%p716) target = $region68
      $region67: #{tpu_custom_call.1} parent=5 // pred_region
        %s719 = ssub.s32 %s16, 2
      $region68: #{tpu_custom_call.1} parent=5 // pred_fallthru
        _
    $region6: #{tpu_custom_call.1} parent=1 // loop_footer
      %s20 = sadd.s32 1, %s16
    $region7: #{tpu_custom_call.1} parent=1 // loop_footer_branch
      %15 = sbr.rel target = $region3
    $region8: #{tpu_custom_call.1} parent=1 // loop_exit
      _
    %720 = vsyncpa [#allocation7], 1
    %s721 = scalar_lea.sflag [#allocation7], 1
    %722 = vsyncpa %s721, 1

</llo_original>
